<compile_context>
chip_gen: v7x
topology: tpu7x:2x2x1
jax: 0.10.0
libtpu: 0.0.40
codegen_flags: <defaults>
</compile_context>

<pallas_src>
import numpy as np
import jax
import jax.numpy as jnp
from jax import lax
from jax.experimental import pallas as pl
from jax.experimental.pallas import tpu as pltpu

NUM_ENT   = 16   # N  (number of entities / nodes)
NUM_REL   = 6    # R  (number of relations)
NUM_BASES = 3    # B
IN_DIM    = 32
OUT_DIM   = 32   # layer_size = [32]
BN_EPS    = 1e-5


def compgcn_kernel(
    n_ref,        # [N, Din]        entity embeddings
    etmask_ref,   # [R, N, N]       one-hot relation adjacency (r, dst, src)
    wproj_ref,    # [Din, 4*Dout]   concat(wk | wq | wv_eff | ws_eff)
    bproj_ref,    # [1, 4*Dout]     concat(bk | bq | bv_eff | bs_eff+shift)
    rw_ref,       # [R, Dout]       w_comp @ relation_att (precomputed)
    wrel_ref,     # [R, B]          CompGCN.weights
    wreff_ref,    # [B, Dout]       basis @ W_R  (precomputed)
    br_ref,       # [1, Dout]       W_R bias
    n_out_ref,    # [N, Dout]
    r_out_ref,    # [R, Dout]
):
    h = n_ref[...]                                                    # [N, Din]

    # --- single fused projection: one MXU push, lane-dense 128-wide output ---
    proj = jnp.dot(h, wproj_ref[...],
                   preferred_element_type=jnp.float32) + bproj_ref[...]   # [N, 4*Dout]
    k = proj[:, 0 * OUT_DIM:1 * OUT_DIM]                              # [N, Dout]
    q = proj[:, 1 * OUT_DIM:2 * OUT_DIM]                              # [N, Dout]
    v = proj[:, 2 * OUT_DIM:3 * OUT_DIM]   # pre-scaled by (1-sig(alpha))*bn_scale
    s = proj[:, 3 * OUT_DIM:4 * OUT_DIM]   # pre-scaled by sig(alpha)*bn_scale, shift in bias

    # --- attention logits: ONE batched matmul instead of 6 per-relation ones ---
    # qr_flat[r*N + d, c] = q[d, c] * rw[r, c]
    rw = rw_ref[...]                                                  # [R, Dout]
    qr_flat = jnp.concatenate(
        [q * rw[r:r + 1, :] for r in range(NUM_REL)], axis=0)         # [R*N, Dout]
    lg_flat = lax.dot_general(qr_flat, k, (((1,), (1,)), ((), ())),
                              preferred_element_type=jnp.float32)     # [R*N, N_src]

    # masked accumulation over relation types (small static VALU loop)
    adj = jnp.zeros((NUM_ENT, NUM_ENT), jnp.float32)
    logits = jnp.zeros((NUM_ENT, NUM_ENT), jnp.float32)
    for r in range(NUM_REL):
        mr = etmask_ref[r]                                            # [N, N] (dst, src)
        adj = adj + mr
        logits = logits + mr * lg_flat[r * NUM_ENT:(r + 1) * NUM_ENT, :]

    # --- masked softmax over incoming edges of each destination node ---
    has_edge = adj > 0.0
    masked = jnp.where(has_edge, logits, jnp.float32(-1e30))
    mx = jnp.max(masked, axis=-1, keepdims=True)
    e = jnp.where(has_edge, jnp.exp(masked - mx), 0.0)
    denom = jnp.maximum(jnp.sum(e, axis=-1, keepdims=True), jnp.float32(1e-30))
    att = e * pl.reciprocal(denom, approx=True)
    final = jnp.dot(att, v, preferred_element_type=jnp.float32)       # [N, Dout]

    # alpha gate + BatchNorm are already folded into s / v; just add and activate.
    n_out_ref[...] = jnp.tanh(s + final)

    # relation branch: r_out = weights @ (basis @ W_R) + br
    r_out_ref[...] = jnp.dot(wrel_ref[...], wreff_ref[...],
                             preferred_element_type=jnp.float32) + br_ref[...]


@jax.jit
def compgcn_forward(params, et_mask):
    # ---- parameter-only folding (trace-time; cacheable across inference calls) ----
    a = jax.nn.sigmoid(params["alpha"])                                   # [1, 1]
    scale = params["bn_gamma"] * lax.rsqrt(params["bn_var"] + BN_EPS)     # [1, Dout]
    shift = params["bn_beta"] - params["bn_mean"] * scale                 # [1, Dout]
    sv = (1.0 - a) * scale                                                # v-branch scale
    ss = a * scale                                                        # W_S-branch scale

    w_proj = jnp.concatenate(
        [params["wk"], params["wq"], params["wv"] * sv, params["ws"] * ss], axis=1)   # [Din, 4*Dout]
    b_proj = jnp.concatenate(
        [params["bk"], params["bq"], params["bv"] * sv, params["bs"] * ss + shift],
        axis=1)                                                                        # [1, 4*Dout]
    rw = jnp.dot(params["w_comp"], params["relation_att"])                # [R, Dout]
    wr_eff = jnp.dot(params["basis"], params["wr"])                       # [B, Dout]

    inputs = (params["n_embds"], et_mask, w_proj, b_proj, rw,
              params["weights"], wr_eff, params["br"])

    vmem = lambda: pl.BlockSpec(memory_space=pltpu.MemorySpace.VMEM)
    return pl.pallas_call(
        compgcn_kernel,
        out_shape=(
            jax.ShapeDtypeStruct((NUM_ENT, OUT_DIM), jnp.float32),
            jax.ShapeDtypeStruct((NUM_REL, OUT_DIM), jnp.float32),
        ),
        in_specs=[vmem() for _ in inputs],
        out_specs=(vmem(), vmem()),
    )(*inputs)
    # TODO(synk): for many-graph workloads, stack inputs as [G, ...] and add a
    # "parallel" grid axis over G (exploits both v7x TensorCores).


def reference_forward(params, et_mask):
    """Plain-JAX reference mirroring the PyTorch forward (eval mode), unfolded."""
    h = params["n_embds"]
    k = h @ params["wk"] + params["bk"]
    q = h @ params["wq"] + params["bq"]
    v = h @ params["wv"] + params["bv"]
    s_proj = h @ params["ws"] + params["bs"]
    rw = params["w_comp"] @ params["relation_att"]
    adj = et_mask.sum(0)
    logits = jnp.einsum("dc,rc,sc,rds->ds", q, rw, k, et_mask)
    has_edge = adj > 0.0
    masked = jnp.where(has_edge, logits, -1e30)
    e = jnp.where(has_edge, jnp.exp(masked - masked.max(-1, keepdims=True)), 0.0)
    att = e / e.sum(-1, keepdims=True)
    final = att @ v
    a = jax.nn.sigmoid(params["alpha"])
    n_out = a * s_proj + (1.0 - a) * final
    n_out = (n_out - params["bn_mean"]) / jnp.sqrt(params["bn_var"] + BN_EPS)
    n_out = n_out * params["bn_gamma"] + params["bn_beta"]
    n_out = jnp.tanh(n_out)
    r_feats = params["weights"] @ params["basis"]
    r_out = r_feats @ params["wr"] + params["br"]
    return n_out, r_out


def init_params(key):
    def xavier(key, shape):
        fan_out, fan_in = shape[0], shape[-1]
        std = np.sqrt(2.0 / (fan_in + fan_out))
        return jax.random.normal(key, shape, jnp.float32) * std

    keys = jax.random.split(key, 16)
    p = {}
    p["n_embds"] = xavier(keys[0], (NUM_ENT, IN_DIM))
    p["basis"] = xavier(keys[1], (NUM_BASES, IN_DIM))
    p["weights"] = xavier(keys[2], (NUM_REL, NUM_BASES))
    # linear weights stored pre-transposed as [in, out]
    p["wk"] = xavier(keys[3], (IN_DIM, OUT_DIM))
    p["wq"] = xavier(keys[4], (IN_DIM, OUT_DIM))
    p["wv"] = xavier(keys[5], (IN_DIM, OUT_DIM))
    p["ws"] = xavier(keys[6], (IN_DIM, OUT_DIM))
    p["wr"] = xavier(keys[7], (IN_DIM, OUT_DIM))
    p["bk"] = 0.05 * jax.random.normal(keys[8], (1, OUT_DIM), jnp.float32)
    p["bq"] = 0.05 * jax.random.normal(keys[9], (1, OUT_DIM), jnp.float32)
    p["bv"] = 0.05 * jax.random.normal(keys[10], (1, OUT_DIM), jnp.float32)
    p["bs"] = 0.05 * jax.random.normal(keys[11], (1, OUT_DIM), jnp.float32)
    p["br"] = 0.05 * jax.random.normal(keys[12], (1, OUT_DIM), jnp.float32)
    p["relation_att"] = xavier(keys[13], (NUM_BASES, OUT_DIM))
    p["w_comp"] = xavier(keys[14], (NUM_REL, NUM_BASES))
    p["alpha"] = jnp.ones((1, 1), jnp.float32)          # nn.Parameter(th.ones(1))
    p["bn_gamma"] = jnp.ones((1, OUT_DIM), jnp.float32)
    p["bn_beta"] = jnp.zeros((1, OUT_DIM), jnp.float32)
    p["bn_mean"] = jnp.zeros((1, OUT_DIM), jnp.float32)
    p["bn_var"] = jnp.ones((1, OUT_DIM), jnp.float32)
    # loop_rel is a parameter of the module but (after the [:-1] slice) it never
    # affects the returned values, so it is omitted here.
    return p


def build_graph():
    """Deterministic small graph: every node has in-degree 3, one etype per edge."""
    et_mask = np.zeros((NUM_REL, NUM_ENT, NUM_ENT), np.float32)
    offsets = [1, 3, 7]
    for d in range(NUM_ENT):
        for j, off in enumerate(offsets):
            s = (d + off) % NUM_ENT
            r = (d + j) % NUM_REL
            et_mask[r, d, s] = 1.0
    # at most one relation per (dst, src) pair (softmax/one-hot assumption)
    assert et_mask.sum(0).max() <= 1.0
    return jnp.asarray(et_mask)


if __name__ == "__main__":
    key = jax.random.PRNGKey(0)
    params = init_params(key)
    et_mask = build_graph()

    n_out, r_out = compgcn_forward(params, et_mask)
    jax.block_until_ready((n_out, r_out))

    n_ref, r_ref = reference_forward(params, et_mask)
    np.testing.assert_allclose(np.asarray(n_out), np.asarray(n_ref), rtol=5e-2, atol=1e-2)
    np.testing.assert_allclose(np.asarray(r_out), np.asarray(r_ref), rtol=5e-2, atol=1e-2)

    assert n_out.shape == (NUM_ENT, OUT_DIM) and r_out.shape == (NUM_REL, OUT_DIM)
    print("KERNEL_OK")
</pallas_src>

<mosaic_0001>
module attributes {stable_mosaic.version = 11 : i64} {
  func.func @compgcn_kernel(%arg0: memref<16x32xf32, #tpu.memory_space<vmem>>, %arg1: memref<6x16x16xf32, #tpu.memory_space<vmem>>, %arg2: memref<32x128xf32, #tpu.memory_space<vmem>>, %arg3: memref<1x128xf32, #tpu.memory_space<vmem>>, %arg4: memref<6x32xf32, #tpu.memory_space<vmem>>, %arg5: memref<6x3xf32, #tpu.memory_space<vmem>>, %arg6: memref<3x32xf32, #tpu.memory_space<vmem>>, %arg7: memref<1x32xf32, #tpu.memory_space<vmem>>, %arg8: memref<16x32xf32, #tpu.memory_space<vmem>>, %arg9: memref<6x32xf32, #tpu.memory_space<vmem>>) attributes {dimension_semantics = [], scalar_prefetch = 0 : i64, scratch_operands = 0 : i64, tpu.core_type = #tpu.core_type<tc>} {
    %c0 = arith.constant 0 : index
    %c0_0 = arith.constant 0 : index
    %0 = vector.load %arg0[%c0, %c0_0] : memref<16x32xf32, #tpu.memory_space<vmem>>, vector<16x32xf32>
    %c0_1 = arith.constant 0 : index
    %c0_2 = arith.constant 0 : index
    %1 = vector.load %arg2[%c0_1, %c0_2] : memref<32x128xf32, #tpu.memory_space<vmem>>, vector<32x128xf32>
    %cst = arith.constant dense<0.000000e+00> : vector<16x128xf32>
    %2 = tpu.matmul %0, %1, %cst {dimension_numbers = #tpu.dot_dimension_numbers<[1], [0], [0], [1], [0, 0, 1, 1], [], []>} : vector<16x32xf32>, vector<32x128xf32>, vector<16x128xf32> -> vector<16x128xf32>
    %c0_3 = arith.constant 0 : index
    %c0_4 = arith.constant 0 : index
    %3 = vector.load %arg3[%c0_3, %c0_4] : memref<1x128xf32, #tpu.memory_space<vmem>>, vector<1x128xf32>
    %4 = vector.broadcast %3 : vector<1x128xf32> to vector<16x128xf32>
    %5 = arith.addf %2, %4 : vector<16x128xf32>
    %6 = vector.extract_strided_slice %5 {offsets = [0, 0], sizes = [16, 32], strides = [1, 1]} : vector<16x128xf32> to vector<16x32xf32>
    %7 = vector.extract_strided_slice %5 {offsets = [0, 32], sizes = [16, 32], strides = [1, 1]} : vector<16x128xf32> to vector<16x32xf32>
    %8 = vector.extract_strided_slice %5 {offsets = [0, 64], sizes = [16, 32], strides = [1, 1]} : vector<16x128xf32> to vector<16x32xf32>
    %9 = vector.extract_strided_slice %5 {offsets = [0, 96], sizes = [16, 32], strides = [1, 1]} : vector<16x128xf32> to vector<16x32xf32>
    %c0_5 = arith.constant 0 : index
    %c0_6 = arith.constant 0 : index
    %10 = vector.load %arg4[%c0_5, %c0_6] : memref<6x32xf32, #tpu.memory_space<vmem>>, vector<6x32xf32>
    %11 = vector.extract_strided_slice %10 {offsets = [0, 0], sizes = [1, 32], strides = [1, 1]} : vector<6x32xf32> to vector<1x32xf32>
    %12 = vector.broadcast %11 : vector<1x32xf32> to vector<16x32xf32>
    %13 = arith.mulf %7, %12 : vector<16x32xf32>
    %14 = vector.extract_strided_slice %10 {offsets = [1, 0], sizes = [1, 32], strides = [1, 1]} : vector<6x32xf32> to vector<1x32xf32>
    %15 = vector.broadcast %14 : vector<1x32xf32> to vector<16x32xf32>
    %16 = arith.mulf %7, %15 : vector<16x32xf32>
    %17 = vector.extract_strided_slice %10 {offsets = [2, 0], sizes = [1, 32], strides = [1, 1]} : vector<6x32xf32> to vector<1x32xf32>
    %18 = vector.broadcast %17 : vector<1x32xf32> to vector<16x32xf32>
    %19 = arith.mulf %7, %18 : vector<16x32xf32>
    %20 = vector.extract_strided_slice %10 {offsets = [3, 0], sizes = [1, 32], strides = [1, 1]} : vector<6x32xf32> to vector<1x32xf32>
    %21 = vector.broadcast %20 : vector<1x32xf32> to vector<16x32xf32>
    %22 = arith.mulf %7, %21 : vector<16x32xf32>
    %23 = vector.extract_strided_slice %10 {offsets = [4, 0], sizes = [1, 32], strides = [1, 1]} : vector<6x32xf32> to vector<1x32xf32>
    %24 = vector.broadcast %23 : vector<1x32xf32> to vector<16x32xf32>
    %25 = arith.mulf %7, %24 : vector<16x32xf32>
    %26 = vector.extract_strided_slice %10 {offsets = [5, 0], sizes = [1, 32], strides = [1, 1]} : vector<6x32xf32> to vector<1x32xf32>
    %27 = vector.broadcast %26 : vector<1x32xf32> to vector<16x32xf32>
    %28 = arith.mulf %7, %27 : vector<16x32xf32>
    %29 = tpu.concatenate %13, %16, %19, %22, %25, %28 in 0 : vector<16x32xf32>, vector<16x32xf32>, vector<16x32xf32>, vector<16x32xf32>, vector<16x32xf32>, vector<16x32xf32> -> vector<96x32xf32>
    %cst_7 = arith.constant dense<0.000000e+00> : vector<96x16xf32>
    %30 = tpu.matmul %29, %6, %cst_7 {dimension_numbers = #tpu.dot_dimension_numbers<[1], [1], [0], [0], [0, 0, 1, 0], [], []>} : vector<96x32xf32>, vector<16x32xf32>, vector<96x16xf32> -> vector<96x16xf32>
    %cst_8 = arith.constant 0.000000e+00 : f32
    %31 = vector.broadcast %cst_8 : f32 to vector<16x16xf32>
    %cst_9 = arith.constant 0.000000e+00 : f32
    %32 = vector.broadcast %cst_9 : f32 to vector<16x16xf32>
    %c0_10 = arith.constant 0 : index
    %c0_11 = arith.constant 0 : index
    %c0_12 = arith.constant 0 : index
    %33 = vector.load %arg1[%c0_10, %c0_11, %c0_12] : memref<6x16x16xf32, #tpu.memory_space<vmem>>, vector<1x16x16xf32>
    %34 = vector.shape_cast %33 : vector<1x16x16xf32> to vector<16x16xf32>
    %35 = arith.addf %31, %34 : vector<16x16xf32>
    %36 = vector.extract_strided_slice %30 {offsets = [0, 0], sizes = [16, 16], strides = [1, 1]} : vector<96x16xf32> to vector<16x16xf32>
    %37 = arith.mulf %34, %36 : vector<16x16xf32>
    %38 = arith.addf %32, %37 : vector<16x16xf32>
    %c1 = arith.constant 1 : index
    %c0_13 = arith.constant 0 : index
    %c0_14 = arith.constant 0 : index
    %39 = vector.load %arg1[%c1, %c0_13, %c0_14] : memref<6x16x16xf32, #tpu.memory_space<vmem>>, vector<1x16x16xf32>
    %40 = vector.shape_cast %39 : vector<1x16x16xf32> to vector<16x16xf32>
    %41 = arith.addf %35, %40 : vector<16x16xf32>
    %42 = vector.extract_strided_slice %30 {offsets = [16, 0], sizes = [16, 16], strides = [1, 1]} : vector<96x16xf32> to vector<16x16xf32>
    %43 = arith.mulf %40, %42 : vector<16x16xf32>
    %44 = arith.addf %38, %43 : vector<16x16xf32>
    %c2 = arith.constant 2 : index
    %c0_15 = arith.constant 0 : index
    %c0_16 = arith.constant 0 : index
    %45 = vector.load %arg1[%c2, %c0_15, %c0_16] : memref<6x16x16xf32, #tpu.memory_space<vmem>>, vector<1x16x16xf32>
    %46 = vector.shape_cast %45 : vector<1x16x16xf32> to vector<16x16xf32>
    %47 = arith.addf %41, %46 : vector<16x16xf32>
    %48 = vector.extract_strided_slice %30 {offsets = [32, 0], sizes = [16, 16], strides = [1, 1]} : vector<96x16xf32> to vector<16x16xf32>
    %49 = arith.mulf %46, %48 : vector<16x16xf32>
    %50 = arith.addf %44, %49 : vector<16x16xf32>
    %c3 = arith.constant 3 : index
    %c0_17 = arith.constant 0 : index
    %c0_18 = arith.constant 0 : index
    %51 = vector.load %arg1[%c3, %c0_17, %c0_18] : memref<6x16x16xf32, #tpu.memory_space<vmem>>, vector<1x16x16xf32>
    %52 = vector.shape_cast %51 : vector<1x16x16xf32> to vector<16x16xf32>
    %53 = arith.addf %47, %52 : vector<16x16xf32>
    %54 = vector.extract_strided_slice %30 {offsets = [48, 0], sizes = [16, 16], strides = [1, 1]} : vector<96x16xf32> to vector<16x16xf32>
    %55 = arith.mulf %52, %54 : vector<16x16xf32>
    %56 = arith.addf %50, %55 : vector<16x16xf32>
    %c4 = arith.constant 4 : index
    %c0_19 = arith.constant 0 : index
    %c0_20 = arith.constant 0 : index
    %57 = vector.load %arg1[%c4, %c0_19, %c0_20] : memref<6x16x16xf32, #tpu.memory_space<vmem>>, vector<1x16x16xf32>
    %58 = vector.shape_cast %57 : vector<1x16x16xf32> to vector<16x16xf32>
    %59 = arith.addf %53, %58 : vector<16x16xf32>
    %60 = vector.extract_strided_slice %30 {offsets = [64, 0], sizes = [16, 16], strides = [1, 1]} : vector<96x16xf32> to vector<16x16xf32>
    %61 = arith.mulf %58, %60 : vector<16x16xf32>
    %62 = arith.addf %56, %61 : vector<16x16xf32>
    %c5 = arith.constant 5 : index
    %c0_21 = arith.constant 0 : index
    %c0_22 = arith.constant 0 : index
    %63 = vector.load %arg1[%c5, %c0_21, %c0_22] : memref<6x16x16xf32, #tpu.memory_space<vmem>>, vector<1x16x16xf32>
    %64 = vector.shape_cast %63 : vector<1x16x16xf32> to vector<16x16xf32>
    %65 = arith.addf %59, %64 : vector<16x16xf32>
    %66 = vector.extract_strided_slice %30 {offsets = [80, 0], sizes = [16, 16], strides = [1, 1]} : vector<96x16xf32> to vector<16x16xf32>
    %67 = arith.mulf %64, %66 : vector<16x16xf32>
    %68 = arith.addf %62, %67 : vector<16x16xf32>
    %cst_23 = arith.constant 0.000000e+00 : f32
    %69 = vector.broadcast %cst_23 : f32 to vector<16x16xf32>
    %70 = arith.cmpf ogt, %65, %69 : vector<16x16xf32>
    %cst_24 = arith.constant -1.000000e+30 : f32
    %71 = vector.broadcast %cst_24 : f32 to vector<16x16xf32>
    %72 = arith.select %70, %68, %71 : vector<16x16xi1>, vector<16x16xf32>
    %cst_25 = arith.constant dense<0xFF800000> : vector<16xf32>
    %73 = vector.multi_reduction <maximumf>, %72, %cst_25 [1] : vector<16x16xf32> to vector<16xf32>
    %74 = vector.shape_cast %73 : vector<16xf32> to vector<16x1xf32>
    %75 = vector.broadcast %74 : vector<16x1xf32> to vector<16x16xf32>
    %76 = arith.subf %72, %75 : vector<16x16xf32>
    %77 = math.exp %76 : vector<16x16xf32>
    %cst_26 = arith.constant 0.000000e+00 : f32
    %78 = vector.broadcast %cst_26 : f32 to vector<16x16xf32>
    %79 = arith.select %70, %77, %78 : vector<16x16xi1>, vector<16x16xf32>
    %cst_27 = arith.constant dense<0.000000e+00> : vector<16xf32>
    %80 = vector.multi_reduction <add>, %79, %cst_27 [1] : vector<16x16xf32> to vector<16xf32>
    %81 = vector.shape_cast %80 : vector<16xf32> to vector<16x1xf32>
    %cst_28 = arith.constant 1.000000e-30 : f32
    %82 = vector.broadcast %cst_28 : f32 to vector<16x1xf32>
    %83 = arith.maximumf %81, %82 : vector<16x1xf32>
    %84 = tpu.reciprocal %83 {approx = true} : vector<16x1xf32> -> vector<16x1xf32>
    %85 = vector.broadcast %84 : vector<16x1xf32> to vector<16x16xf32>
    %86 = arith.mulf %79, %85 : vector<16x16xf32>
    %cst_29 = arith.constant dense<0.000000e+00> : vector<16x32xf32>
    %87 = tpu.matmul %86, %8, %cst_29 {dimension_numbers = #tpu.dot_dimension_numbers<[1], [0], [0], [1], [0, 0, 1, 1], [], []>} : vector<16x16xf32>, vector<16x32xf32>, vector<16x32xf32> -> vector<16x32xf32>
    %88 = arith.addf %9, %87 : vector<16x32xf32>
    %89 = math.tanh %88 : vector<16x32xf32>
    %c0_30 = arith.constant 0 : index
    %c0_31 = arith.constant 0 : index
    %90 = vector.load %arg8[%c0_30, %c0_31] : memref<16x32xf32, #tpu.memory_space<vmem>>, vector<16x32xf32>
    tpu.vector_store %arg8[%c0_30, %c0_31], %89 {strides = array<i32>} : memref<16x32xf32, #tpu.memory_space<vmem>>, vector<16x32xf32>,
    %c0_32 = arith.constant 0 : index
    %c0_33 = arith.constant 0 : index
    %91 = vector.load %arg5[%c0_32, %c0_33] : memref<6x3xf32, #tpu.memory_space<vmem>>, vector<6x3xf32>
    %c0_34 = arith.constant 0 : index
    %c0_35 = arith.constant 0 : index
    %92 = vector.load %arg6[%c0_34, %c0_35] : memref<3x32xf32, #tpu.memory_space<vmem>>, vector<3x32xf32>
    %cst_36 = arith.constant dense<0.000000e+00> : vector<6x32xf32>
    %93 = tpu.matmul %91, %92, %cst_36 {dimension_numbers = #tpu.dot_dimension_numbers<[1], [0], [0], [1], [0, 0, 1, 1], [], []>} : vector<6x3xf32>, vector<3x32xf32>, vector<6x32xf32> -> vector<6x32xf32>
    %c0_37 = arith.constant 0 : index
    %c0_38 = arith.constant 0 : index
    %94 = vector.load %arg7[%c0_37, %c0_38] : memref<1x32xf32, #tpu.memory_space<vmem>>, vector<1x32xf32>
    %95 = vector.broadcast %94 : vector<1x32xf32> to vector<6x32xf32>
    %96 = arith.addf %93, %95 : vector<6x32xf32>
    %c0_39 = arith.constant 0 : index
    %c0_40 = arith.constant 0 : index
    %97 = vector.load %arg9[%c0_39, %c0_40] : memref<6x32xf32, #tpu.memory_space<vmem>>, vector<6x32xf32>
    tpu.vector_store %arg9[%c0_39, %c0_40], %96 {strides = array<i32>} : memref<6x32xf32, #tpu.memory_space<vmem>>, vector<6x32xf32>,
    return
  }
}

</mosaic_0001>

<llo_original>
// kernel: compgcn_forward.1
$region0: #{compgcn_forward.1}
  #allocation0 [shape = 'u32[]', space=smem, size = 0x4, offset = 0x4, fixed_abs, tag = 'smem constant byte address 0x4 - core index']
  #allocation1 [shape = 'u32[144,128]{1,0:T(1,128)}', space=vmem, size = 0x12000, scoped, tag = 'internal scratch']
  %s0 = inlined_call_operand.vmem [shape: f32[16,32], index: 0, kind: input, shape index: {}]
  %s1 = inlined_call_operand.vmem [shape: f32[6,16,16], index: 1, kind: input, shape index: {}]
  %s2 = inlined_call_operand.vmem [shape: f32[32,128], index: 2, kind: input, shape index: {}]
  %s3 = inlined_call_operand.vmem [shape: f32[1,128], index: 3, kind: input, shape index: {}]
  %s4 = inlined_call_operand.vmem [shape: f32[6,32], index: 4, kind: input, shape index: {}]
  %s5 = inlined_call_operand.vmem [shape: f32[6,3], index: 5, kind: input, shape index: {}]
  %s6 = inlined_call_operand.vmem [shape: f32[3,32], index: 6, kind: input, shape index: {}]
  %s7 = inlined_call_operand.vmem [shape: f32[1,32], index: 7, kind: input, shape index: {}]
  %s8 = inlined_call_operand.hbm [shape: f32[16,32], index: 8, kind: output, shape index: {0}]
  %s9 = inlined_call_operand.hbm [shape: f32[6,32], index: 9, kind: output, shape index: {1}]
  %10 = xla_tuple %s8, %s9
  %s11 = sld [smem:[#allocation0]]
  $region50: #{compgcn_forward.1} parent=0
    _
  %s13 = ssub.s32 1, %s11
  %s14 = scalar_select 0, %s13, %s11
  $region1: #{compgcn_forward.1} parent=0
    #allocation2 [shape = 'u8[8192]{0}', space=vmem, size = 0x2000, scoped, tag = 'output window, operand 0, single buffered']
    #allocation3 [shape = 's32[1]{0}', space=sflag, size = 0x4, scoped, tag = 'scoped memory for compgcn_forward.1']
    #allocation4 [shape = 'u8[4096]{0}', space=vmem, size = 0x1000, scoped, tag = 'output window, operand 1, single buffered']
    #allocation5 [shape = 's32[1]{0}', space=sflag, size = 0x4, scoped, tag = 'scoped memory for compgcn_forward.1']
    %15 = vsyncpa [#allocation3], 0
    %16 = vsyncpa [#allocation5], 0
    // Predicated region
    $region2: #{compgcn_forward.1} parent=1 // pred_check
      _
    $region3: #{compgcn_forward.1} parent=1 // pred_check_branch
      %18 = sbr.rel (0) target = $region5
    $region4: #{compgcn_forward.1} parent=1 // pred_region
      _
    $region5: #{compgcn_forward.1} parent=1 // pred_fallthru
      _
    // Predicated region
    $region6: #{compgcn_forward.1} parent=1 // pred_check
      _
    $region7: #{compgcn_forward.1} parent=1 // pred_check_branch
      %20 = sbr.rel (0) target = $region9
    $region8: #{compgcn_forward.1} parent=1 // pred_region
      _
    $region9: #{compgcn_forward.1} parent=1 // pred_fallthru
      _
    // Predicated region
    $region10: #{compgcn_forward.1} parent=1 // pred_check
      _
    $region11: #{compgcn_forward.1} parent=1 // pred_check_branch
      %22 = sbr.rel (0) target = $region13
    $region12: #{compgcn_forward.1} parent=1 // pred_region
      _
    $region13: #{compgcn_forward.1} parent=1 // pred_fallthru
      _
    // Predicated region
    $region14: #{compgcn_forward.1} parent=1 // pred_check
      _
    $region15: #{compgcn_forward.1} parent=1 // pred_check_branch
      %24 = sbr.rel (0) target = $region17
    $region16: #{compgcn_forward.1} parent=1 // pred_region
      _
    $region17: #{compgcn_forward.1} parent=1 // pred_fallthru
      _
    // Predicated region
    $region18: #{compgcn_forward.1} parent=1 // pred_check
      _
    $region19: #{compgcn_forward.1} parent=1 // pred_check_branch
      %26 = sbr.rel (0) target = $region21
    $region20: #{compgcn_forward.1} parent=1 // pred_region
      _
    $region21: #{compgcn_forward.1} parent=1 // pred_fallthru
      _
    // Predicated region
    $region22: #{compgcn_forward.1} parent=1 // pred_check
      _
    $region23: #{compgcn_forward.1} parent=1 // pred_check_branch
      %28 = sbr.rel (0) target = $region25
    $region24: #{compgcn_forward.1} parent=1 // pred_region
      _
    $region25: #{compgcn_forward.1} parent=1 // pred_fallthru
      _
    // Predicated region
    $region26: #{compgcn_forward.1} parent=1 // pred_check
      _
    $region27: #{compgcn_forward.1} parent=1 // pred_check_branch
      %30 = sbr.rel (0) target = $region29
    $region28: #{compgcn_forward.1} parent=1 // pred_region
      _
    $region29: #{compgcn_forward.1} parent=1 // pred_fallthru
      _
    // Predicated region
    $region30: #{compgcn_forward.1} parent=1 // pred_check
      _
    $region31: #{compgcn_forward.1} parent=1 // pred_check_branch
      %32 = sbr.rel (0) target = $region33
    $region32: #{compgcn_forward.1} parent=1 // pred_region
      _
    $region33: #{compgcn_forward.1} parent=1 // pred_fallthru
      _
    %v33 = vld [vmem:[%s0] sm:$0xff]
    %v34 = vld [vmem:[%s0 + $0x8] sm:$0xff]
    %v35 = vld [vmem:[%s2] sm:$0xff]
    %v36 = vld [vmem:[%s2 + $0x8] sm:$0xff]
    %v37 = vld [vmem:[%s2 + $0x10] sm:$0xff]
    %v38 = vld [vmem:[%s2 + $0x18] sm:$0xff]
    %v39 = vld [vmem:[%s3] sm:$0x1]
    %v41 = vlaneseq
    %v42 = vshrl.u32 %v41, 7
    %v43 = vsub.s32 0, %v42
    %v44 = vrot.slane %v39, %v43
    %vm46 = vcmask 261120
    %v48 = vsel %vm46, %v33, 0
    %v51 = vsel %vm46, %v34, 0
    %53 = vmatprep.subr.mxu0 0.0
    %54 = vmatpush1.msra.mxu0 %v35
    %55 = vmatprep.subr.mxu0 0.0
    %56 = vmatpush1.msra.mxu0 %v36
    %57 = vmatprep.subr.mxu0 0.0
    %58 = vmatpush1.msra.mxu0 %v37
    %59 = vmatprep.subr.mxu0 0.0
    %60 = vmatpush1.msra.mxu0 %v38
    %61 = vmatprep.subr.mxu0 0.0
    %62 = vmatpush1.msra.mxu0 0.0
    %63 = vmatprep.subr.mxu0 0.0
    %64 = vmatpush1.msra.mxu0 0.0
    %65 = vmatprep.subr.mxu0 0.0
    %66 = vmatpush1.msra.mxu0 0.0
    %67 = vmatprep.subr.mxu0 0.0
    %68 = vmatpush1.msra.mxu0 0.0
    %69 = vmatprep.subr.mxu0 0.0
    %70 = vmatpush1.msra.mxu0 0.0
    %71 = vmatprep.subr.mxu0 0.0
    %72 = vmatpush1.msra.mxu0 0.0
    %73 = vmatprep.subr.mxu0 0.0
    %74 = vmatpush1.msra.mxu0 0.0
    %75 = vmatprep.subr.mxu0 0.0
    %76 = vmatpush1.msra.mxu0 0.0
    %77 = vmatprep.subr.mxu0 0.0
    %78 = vmatpush1.msra.mxu0 0.0
    %79 = vmatprep.subr.mxu0 0.0
    %80 = vmatpush1.msra.mxu0 0.0
    %81 = vmatprep.subr.mxu0 0.0
    %82 = vmatpush1.msra.mxu0 0.0
    %83 = vmatprep.subr.mxu0 0.0
    %84 = vmatpush1.msra.mxu0 0.0
    %85 = vmatprep.subr.mxu0 0.0
    %86 = vmatpush1.msra.mxu0 0.0
    %87 = vmatprep.subr.mxu0 0.0
    %88 = vmatpush1.msra.mxu0 0.0
    %89 = vmatprep.subr.mxu0 0.0
    %90 = vmatpush1.msra.mxu0 0.0
    %91 = vmatprep.subr.mxu0 0.0
    %92 = vmatpush1.msra.mxu0 0.0
    %93 = vmatprep.subr.mxu0 0.0
    %94 = vmatpush1.msra.mxu0 0.0
    %95 = vmatprep.subr.mxu0 0.0
    %96 = vmatpush1.msra.mxu0 0.0
    %97 = vmatprep.subr.mxu0 0.0
    %98 = vmatpush1.msra.mxu0 0.0
    %99 = vmatprep.subr.mxu0 0.0
    %100 = vmatpush1.msra.mxu0 0.0
    %101 = vmatprep.subr.mxu0 0.0
    %102 = vmatpush1.msra.mxu0 0.0
    %103 = vmatprep.subr.mxu0 0.0
    %104 = vmatpush1.msra.mxu0 0.0
    %105 = vmatprep.subr.mxu0 0.0
    %106 = vmatpush1.msra.mxu0 0.0
    %107 = vmatprep.subr.mxu0 0.0
    %108 = vmatpush1.msra.mxu0 0.0
    %109 = vmatprep.subr.mxu0 0.0
    %110 = vmatpush1.msra.mxu0 0.0
    %111 = vmatprep.subr.mxu0 0.0
    %112 = vmatpush1.msra.mxu0 0.0
    %113 = vmatprep.subr.mxu0 0.0
    %114 = vmatpush1.msra.mxu0 0.0
    %115 = vmatprep.subr.mxu0 0.0
    %116 = vmatpush1.msra.mxu0 0.0
    %117 = vmatprep.mubr.f32.mxu0 0.0
    %118 = vmatmul.mubr.f32.gmra.mrb[0].mxu0 %v48
    %v119 = vpop.f32.mrb[0].mxu0
    %v120 = vadd.f32 %v44, %v119
    %v121 = vpop.f32.mrb[0].mxu0
    %122 = vmatprep.mubr.f32.mxu0 0.0
    %123 = vmatmul.mubr.f32.gmra.mrb[0].mxu0 %v51
    %v124 = vpop.f32.mrb[0].mxu0
    %v125 = vadd.f32 %v44, %v124
    %v126 = vpop.f32.mrb[0].mxu0
    %127 = vdwg.mxu0
    %v128 = vld [vmem:[%s4] sm:$0x3f]
    %v129 = vlaneseq
    %v130 = vshrl.u32 %v129, 7
    %v131 = vsub.s32 0, %v130
    %v132 = vrot.slane %v128, %v131
    %134 = vrot.lane.b32.xlu0 %v132, 32
    %v135 = vpop.permute.xlu0 %134
    %v137 = vmul.f32 %v120, %v135
    %v138 = vmul.f32 %v125, %v135
    %v139 = vlaneseq
    %v140 = vshrl.u32 %v139, 7
    %v141 = vsub.s32 1, %v140
    %v142 = vrot.slane %v128, %v141
    %144 = vrot.lane.b32.xlu0 %v142, 32
    %v145 = vpop.permute.xlu0 %144
    %v147 = vmul.f32 %v120, %v145
    %v148 = vmul.f32 %v125, %v145
    %v149 = vlaneseq
    %v150 = vshrl.u32 %v149, 7
    %v151 = vsub.s32 2, %v150
    %v152 = vrot.slane %v128, %v151
    %154 = vrot.lane.b32.xlu0 %v152, 32
    %v155 = vpop.permute.xlu0 %154
    %v157 = vmul.f32 %v120, %v155
    %v158 = vmul.f32 %v125, %v155
    %v159 = vlaneseq
    %v160 = vshrl.u32 %v159, 7
    %v161 = vsub.s32 3, %v160
    %v162 = vrot.slane %v128, %v161
    %164 = vrot.lane.b32.xlu0 %v162, 32
    %v165 = vpop.permute.xlu0 %164
    %v167 = vmul.f32 %v120, %v165
    %v168 = vmul.f32 %v125, %v165
    %v169 = vlaneseq
    %v170 = vshrl.u32 %v169, 7
    %v171 = vsub.s32 4, %v170
    %v172 = vrot.slane %v128, %v171
    %174 = vrot.lane.b32.xlu0 %v172, 32
    %v175 = vpop.permute.xlu0 %174
    %v177 = vmul.f32 %v120, %v175
    %v178 = vmul.f32 %v125, %v175
    %v179 = vlaneseq
    %v180 = vshrl.u32 %v179, 7
    %v181 = vsub.s32 5, %v180
    %v182 = vrot.slane %v128, %v181
    %184 = vrot.lane.b32.xlu0 %v182, 32
    %v185 = vpop.permute.xlu0 %184
    %v187 = vmul.f32 %v120, %v185
    %v188 = vmul.f32 %v125, %v185
    %201 = vrot.lane.b32.xlu0 %v137, 96
    %v202 = vpop.permute.xlu0 %201
    %203 = vrot.lane.b32.xlu0 %v138, 96
    %v204 = vpop.permute.xlu0 %203
    %205 = vrot.lane.b32.xlu0 %v147, 96
    %v206 = vpop.permute.xlu0 %205
    %207 = vrot.lane.b32.xlu0 %v148, 96
    %v208 = vpop.permute.xlu0 %207
    %209 = vrot.lane.b32.xlu0 %v157, 96
    %v210 = vpop.permute.xlu0 %209
    %211 = vrot.lane.b32.xlu0 %v158, 96
    %v212 = vpop.permute.xlu0 %211
    %213 = vrot.lane.b32.xlu0 %v167, 96
    %v214 = vpop.permute.xlu0 %213
    %215 = vrot.lane.b32.xlu0 %v168, 96
    %v216 = vpop.permute.xlu0 %215
    %217 = vrot.lane.b32.xlu0 %v177, 96
    %v218 = vpop.permute.xlu0 %217
    %219 = vrot.lane.b32.xlu0 %v178, 96
    %v220 = vpop.permute.xlu0 %219
    %221 = vrot.lane.b32.xlu0 %v187, 96
    %v222 = vpop.permute.xlu0 %221
    %223 = vrot.lane.b32.xlu0 %v188, 96
    %v224 = vpop.permute.xlu0 %223
    %v225 = vsel %vm46, %v202, 0
    %v227 = vsel %vm46, %v204, 0
    %v229 = vsel %vm46, %v206, 0
    %v231 = vsel %vm46, %v208, 0
    %v233 = vsel %vm46, %v210, 0
    %v235 = vsel %vm46, %v212, 0
    %v237 = vsel %vm46, %v214, 0
    %v239 = vsel %vm46, %v216, 0
    %v241 = vsel %vm46, %v218, 0
    %v243 = vsel %vm46, %v220, 0
    %v245 = vsel %vm46, %v222, 0
    %v247 = vsel %vm46, %v224, 0
    %v250 = vsel %vm46, %v120, 0
    %v253 = vsel %vm46, %v125, 0
    %255 = vmatprep.subr.mxu0 0.0
    %256 = vmatpush1.xpose.msra.mxu0 %v250
    %257 = vmatprep.subr.mxu0 0.0
    %258 = vmatpush1.xpose.msra.mxu0 %v253
    %259 = vmatprep.subr.mxu0 0.0
    %260 = vmatpush1.xpose.msra.mxu0 0.0
    %261 = vmatprep.subr.mxu0 0.0
    %262 = vmatpush1.xpose.msra.mxu0 0.0
    %263 = vmatprep.subr.mxu0 0.0
    %264 = vmatpush1.xpose.msra.mxu0 0.0
    %265 = vmatprep.subr.mxu0 0.0
    %266 = vmatpush1.xpose.msra.mxu0 0.0
    %267 = vmatprep.subr.mxu0 0.0
    %268 = vmatpush1.xpose.msra.mxu0 0.0
    %269 = vmatprep.subr.mxu0 0.0
    %270 = vmatpush1.xpose.msra.mxu0 0.0
    %271 = vmatprep.subr.mxu0 0.0
    %272 = vmatpush1.xpose.msra.mxu0 0.0
    %273 = vmatprep.subr.mxu0 0.0
    %274 = vmatpush1.xpose.msra.mxu0 0.0
    %275 = vmatprep.subr.mxu0 0.0
    %276 = vmatpush1.xpose.msra.mxu0 0.0
    %277 = vmatprep.subr.mxu0 0.0
    %278 = vmatpush1.xpose.msra.mxu0 0.0
    %279 = vmatprep.subr.mxu0 0.0
    %280 = vmatpush1.xpose.msra.mxu0 0.0
    %281 = vmatprep.subr.mxu0 0.0
    %282 = vmatpush1.xpose.msra.mxu0 0.0
    %283 = vmatprep.subr.mxu0 0.0
    %284 = vmatpush1.xpose.msra.mxu0 0.0
    %285 = vmatprep.subr.mxu0 0.0
    %286 = vmatpush1.xpose.msra.mxu0 0.0
    %287 = vmatprep.subr.mxu0 0.0
    %288 = vmatpush1.xpose.msra.mxu0 0.0
    %289 = vmatprep.subr.mxu0 0.0
    %290 = vmatpush1.xpose.msra.mxu0 0.0
    %291 = vmatprep.subr.mxu0 0.0
    %292 = vmatpush1.xpose.msra.mxu0 0.0
    %293 = vmatprep.subr.mxu0 0.0
    %294 = vmatpush1.xpose.msra.mxu0 0.0
    %295 = vmatprep.subr.mxu0 0.0
    %296 = vmatpush1.xpose.msra.mxu0 0.0
    %297 = vmatprep.subr.mxu0 0.0
    %298 = vmatpush1.xpose.msra.mxu0 0.0
    %299 = vmatprep.subr.mxu0 0.0
    %300 = vmatpush1.xpose.msra.mxu0 0.0
    %301 = vmatprep.subr.mxu0 0.0
    %302 = vmatpush1.xpose.msra.mxu0 0.0
    %303 = vmatprep.subr.mxu0 0.0
    %304 = vmatpush1.xpose.msra.mxu0 0.0
    %305 = vmatprep.subr.mxu0 0.0
    %306 = vmatpush1.xpose.msra.mxu0 0.0
    %307 = vmatprep.subr.mxu0 0.0
    %308 = vmatpush1.xpose.msra.mxu0 0.0
    %309 = vmatprep.subr.mxu0 0.0
    %310 = vmatpush1.xpose.msra.mxu0 0.0
    %311 = vmatprep.subr.mxu0 0.0
    %312 = vmatpush1.xpose.msra.mxu0 0.0
    %313 = vmatprep.subr.mxu0 0.0
    %314 = vmatpush1.xpose.msra.mxu0 0.0
    %315 = vmatprep.subr.mxu0 0.0
    %316 = vmatpush1.xpose.msra.mxu0 0.0
    %317 = vmatprep.subr.mxu0 0.0
    %318 = vmatpush1.xpose.msra.mxu0 0.0
    %319 = vmatprep.mubr.f32.mxu0 0.0
    %320 = vmatmul.mubr.f32.gmra.mrb[0].mxu0 %v225
    %v321 = vpop.f32.mrb[0].mxu0
    %v322 = vadd.f32 0.0, %v321
    %v323 = vpop.f32.mrb[0].mxu0
    %324 = vmatprep.mubr.f32.mxu0 0.0
    %325 = vmatmul.mubr.f32.gmra.mrb[0].mxu0 %v227
    %v326 = vpop.f32.mrb[0].mxu0
    %v327 = vadd.f32 0.0, %v326
    %v328 = vpop.f32.mrb[0].mxu0
    %329 = vmatprep.mubr.f32.mxu0 0.0
    %330 = vmatmul.mubr.f32.gmra.mrb[0].mxu0 %v229
    %v331 = vpop.f32.mrb[0].mxu0
    %v332 = vadd.f32 0.0, %v331
    %v333 = vpop.f32.mrb[0].mxu0
    %334 = vmatprep.mubr.f32.mxu0 0.0
    %335 = vmatmul.mubr.f32.gmra.mrb[0].mxu0 %v231
    %v336 = vpop.f32.mrb[0].mxu0
    %v337 = vadd.f32 0.0, %v336
    %v338 = vpop.f32.mrb[0].mxu0
    %339 = vmatprep.mubr.f32.mxu0 0.0
    %340 = vmatmul.mubr.f32.gmra.mrb[0].mxu0 %v233
    %v341 = vpop.f32.mrb[0].mxu0
    %v342 = vadd.f32 0.0, %v341
    %v343 = vpop.f32.mrb[0].mxu0
    %344 = vmatprep.mubr.f32.mxu0 0.0
    %345 = vmatmul.mubr.f32.gmra.mrb[0].mxu0 %v235
    %v346 = vpop.f32.mrb[0].mxu0
    %v347 = vadd.f32 0.0, %v346
    %v348 = vpop.f32.mrb[0].mxu0
    %349 = vmatprep.mubr.f32.mxu0 0.0
    %350 = vmatmul.mubr.f32.gmra.mrb[0].mxu0 %v237
    %v351 = vpop.f32.mrb[0].mxu0
    %v352 = vadd.f32 0.0, %v351
    %v353 = vpop.f32.mrb[0].mxu0
    %354 = vmatprep.mubr.f32.mxu0 0.0
    %355 = vmatmul.mubr.f32.gmra.mrb[0].mxu0 %v239
    %v356 = vpop.f32.mrb[0].mxu0
    %v357 = vadd.f32 0.0, %v356
    %v358 = vpop.f32.mrb[0].mxu0
    %359 = vmatprep.mubr.f32.mxu0 0.0
    %360 = vmatmul.mubr.f32.gmra.mrb[0].mxu0 %v241
    %v361 = vpop.f32.mrb[0].mxu0
    %v362 = vadd.f32 0.0, %v361
    %v363 = vpop.f32.mrb[0].mxu0
    %364 = vmatprep.mubr.f32.mxu0 0.0
    %365 = vmatmul.mubr.f32.gmra.mrb[0].mxu0 %v243
    %v366 = vpop.f32.mrb[0].mxu0
    %v367 = vadd.f32 0.0, %v366
    %v368 = vpop.f32.mrb[0].mxu0
    %369 = vmatprep.mubr.f32.mxu0 0.0
    %370 = vmatmul.mubr.f32.gmra.mrb[0].mxu0 %v245
    %v371 = vpop.f32.mrb[0].mxu0
    %v372 = vadd.f32 0.0, %v371
    %v373 = vpop.f32.mrb[0].mxu0
    %374 = vmatprep.mubr.f32.mxu0 0.0
    %375 = vmatmul.mubr.f32.gmra.mrb[0].mxu0 %v247
    %v376 = vpop.f32.mrb[0].mxu0
    %v377 = vadd.f32 0.0, %v376
    %v378 = vpop.f32.mrb[0].mxu0
    %379 = vdwg.mxu0
    %v380 = vld [vmem:[%s1] sm:$0xff]
    %v381 = vld [vmem:[%s1 + $0x8] sm:$0xff]
    %v382 = vadd.f32 %v380, 0.0
    %v383 = vadd.f32 %v381, 0.0
    %v384 = vmul.f32 %v380, %v322
    %v385 = vmul.f32 %v381, %v327
    %v386 = vadd.f32 %v384, 0.0
    %v387 = vadd.f32 %v385, 0.0
    %s388 = scalar_lea.vmem %s1, 16
    %v389 = vld [vmem:[%s388] sm:$0xff]
    %v390 = vld [vmem:[%s388 + $0x8] sm:$0xff]
    %v391 = vadd.f32 %v382, %v389
    %v392 = vadd.f32 %v383, %v390
    %v393 = vmul.f32 %v389, %v332
    %v394 = vmul.f32 %v390, %v337
    %v395 = vadd.f32 %v386, %v393
    %v396 = vadd.f32 %v387, %v394
    %s397 = scalar_lea.vmem %s1, 32
    %v398 = vld [vmem:[%s397] sm:$0xff]
    %v399 = vld [vmem:[%s397 + $0x8] sm:$0xff]
    %v400 = vadd.f32 %v391, %v398
    %v401 = vadd.f32 %v392, %v399
    %v402 = vmul.f32 %v398, %v342
    %v403 = vmul.f32 %v399, %v347
    %v404 = vadd.f32 %v395, %v402
    %v405 = vadd.f32 %v396, %v403
    %s406 = scalar_lea.vmem %s1, 48
    %v407 = vld [vmem:[%s406] sm:$0xff]
    %v408 = vld [vmem:[%s406 + $0x8] sm:$0xff]
    %v409 = vadd.f32 %v400, %v407
    %v410 = vadd.f32 %v401, %v408
    %v411 = vmul.f32 %v407, %v352
    %v412 = vmul.f32 %v408, %v357
    %v413 = vadd.f32 %v404, %v411
    %v414 = vadd.f32 %v405, %v412
    %s415 = scalar_lea.vmem %s1, 64
    %v416 = vld [vmem:[%s415] sm:$0xff]
    %v417 = vld [vmem:[%s415 + $0x8] sm:$0xff]
    %v418 = vadd.f32 %v409, %v416
    %v419 = vadd.f32 %v410, %v417
    %v420 = vmul.f32 %v416, %v362
    %v421 = vmul.f32 %v417, %v367
    %v422 = vadd.f32 %v413, %v420
    %v423 = vadd.f32 %v414, %v421
    %s424 = scalar_lea.vmem %s1, 80
    %v425 = vld [vmem:[%s424] sm:$0xff]
    %v426 = vld [vmem:[%s424 + $0x8] sm:$0xff]
    %v427 = vadd.f32 %v418, %v425
    %v428 = vadd.f32 %v419, %v426
    %v429 = vmul.f32 %v425, %v372
    %v430 = vmul.f32 %v426, %v377
    %v431 = vadd.f32 %v422, %v429
    %v432 = vadd.f32 %v423, %v430
    %vm433 = vcmp.gt.f32.partialorder %v427, 0.0
    %vm434 = vcmp.gt.f32.partialorder %v428, 0.0
    %v435 = vsel %vm433, %v431, -1e+30
    %v436 = vsel %vm434, %v432, -1e+30
    %vm437 = vcmask 130048
    %v438 = vsel %vm437, %v435, -inf
    %439 = vmax.xlane.f32.xlu0 %v438
    %v440 = vpop.xlane.xlu0 %439
    %v441 = vsel %vm437, %v436, -inf
    %442 = vmax.xlane.f32.xlu0 %v441
    %v443 = vpop.xlane.xlu0 %442
    %v444 = vsub.f32 %v435, %v440
    %v445 = vsub.f32 %v436, %v443
    %v446 = vmul.f32 %v444, 1.442695
    %v447 = vpow.pop %v446
    %v448 = vmul.f32 %v445, 1.442695
    %v449 = vpow.pop %v448
    %v450 = vsel %vm433, %v447, 0.0
    %v451 = vsel %vm434, %v449, 0.0
    %v452 = vsel %vm437, %v450, 0.0
    %453 = vadd.xlane.f32.xlu0 %v452
    %v454 = vpop.xlane.xlu0 %453
    %v455 = vsel %vm437, %v451, 0.0
    %456 = vadd.xlane.f32.xlu0 %v455
    %v457 = vpop.xlane.xlu0 %456
    %v458 = vmax.f32 %v454, 1e-30
    %v459 = vmax.f32 %v457, 1e-30
    %v460 = vrcp.pop %v458
    %v461 = vrcp.pop %v459
    %v462 = vmul.f32 %v450, %v460
    %v463 = vmul.f32 %v451, %v461
    %464 = vrot.lane.b32.xlu0 %v120, 64
    %v465 = vpop.permute.xlu0 %464
    %466 = vrot.lane.b32.xlu0 %v125, 64
    %v467 = vpop.permute.xlu0 %466
    %v471 = vsel %vm437, %v462, 0
    %v474 = vsel %vm437, %v463, 0
    %476 = vmatprep.subr.mxu0 0.0
    %477 = vmatpush1.msra.mxu0 %v465
    %478 = vmatprep.subr.mxu0 0.0
    %479 = vmatpush1.msra.mxu0 %v467
    %480 = vmatprep.subr.mxu0 0.0
    %481 = vmatpush1.msra.mxu0 0.0
    %482 = vmatprep.subr.mxu0 0.0
    %483 = vmatpush1.msra.mxu0 0.0
    %484 = vmatprep.subr.mxu0 0.0
    %485 = vmatpush1.msra.mxu0 0.0
    %486 = vmatprep.subr.mxu0 0.0
    %487 = vmatpush1.msra.mxu0 0.0
    %488 = vmatprep.subr.mxu0 0.0
    %489 = vmatpush1.msra.mxu0 0.0
    %490 = vmatprep.subr.mxu0 0.0
    %491 = vmatpush1.msra.mxu0 0.0
    %492 = vmatprep.subr.mxu0 0.0
    %493 = vmatpush1.msra.mxu0 0.0
    %494 = vmatprep.subr.mxu0 0.0
    %495 = vmatpush1.msra.mxu0 0.0
    %496 = vmatprep.subr.mxu0 0.0
    %497 = vmatpush1.msra.mxu0 0.0
    %498 = vmatprep.subr.mxu0 0.0
    %499 = vmatpush1.msra.mxu0 0.0
    %500 = vmatprep.subr.mxu0 0.0
    %501 = vmatpush1.msra.mxu0 0.0
    %502 = vmatprep.subr.mxu0 0.0
    %503 = vmatpush1.msra.mxu0 0.0
    %504 = vmatprep.subr.mxu0 0.0
    %505 = vmatpush1.msra.mxu0 0.0
    %506 = vmatprep.subr.mxu0 0.0
    %507 = vmatpush1.msra.mxu0 0.0
    %508 = vmatprep.subr.mxu0 0.0
    %509 = vmatpush1.msra.mxu0 0.0
    %510 = vmatprep.subr.mxu0 0.0
    %511 = vmatpush1.msra.mxu0 0.0
    %512 = vmatprep.subr.mxu0 0.0
    %513 = vmatpush1.msra.mxu0 0.0
    %514 = vmatprep.subr.mxu0 0.0
    %515 = vmatpush1.msra.mxu0 0.0
    %516 = vmatprep.subr.mxu0 0.0
    %517 = vmatpush1.msra.mxu0 0.0
    %518 = vmatprep.subr.mxu0 0.0
    %519 = vmatpush1.msra.mxu0 0.0
    %520 = vmatprep.subr.mxu0 0.0
    %521 = vmatpush1.msra.mxu0 0.0
    %522 = vmatprep.subr.mxu0 0.0
    %523 = vmatpush1.msra.mxu0 0.0
    %524 = vmatprep.subr.mxu0 0.0
    %525 = vmatpush1.msra.mxu0 0.0
    %526 = vmatprep.subr.mxu0 0.0
    %527 = vmatpush1.msra.mxu0 0.0
    %528 = vmatprep.subr.mxu0 0.0
    %529 = vmatpush1.msra.mxu0 0.0
    %530 = vmatprep.subr.mxu0 0.0
    %531 = vmatpush1.msra.mxu0 0.0
    %532 = vmatprep.subr.mxu0 0.0
    %533 = vmatpush1.msra.mxu0 0.0
    %534 = vmatprep.subr.mxu0 0.0
    %535 = vmatpush1.msra.mxu0 0.0
    %536 = vmatprep.subr.mxu0 0.0
    %537 = vmatpush1.msra.mxu0 0.0
    %538 = vmatprep.subr.mxu0 0.0
    %539 = vmatpush1.msra.mxu0 0.0
    %540 = vmatprep.mubr.f32.mxu0 0.0
    %541 = vmatmul.mubr.f32.gmra.mrb[0].mxu0 %v471
    %v542 = vpop.f32.mrb[0].mxu0
    %v543 = vadd.f32 0.0, %v542
    %v544 = vpop.f32.mrb[0].mxu0
    %545 = vmatprep.mubr.f32.mxu0 0.0
    %546 = vmatmul.mubr.f32.gmra.mrb[0].mxu0 %v474
    %v547 = vpop.f32.mrb[0].mxu0
    %v548 = vadd.f32 0.0, %v547
    %v549 = vpop.f32.mrb[0].mxu0
    %550 = vdwg.mxu0
    %553 = vrot.lane.b32.xlu0 %v543, 96
    %v554 = vpop.permute.xlu0 %553
    %555 = vrot.lane.b32.xlu0 %v548, 96
    %v556 = vpop.permute.xlu0 %555
    %v559 = vadd.f32 %v120, %v554
    %v560 = vadd.f32 %v125, %v556
    %v561 = vtanh.pop %v559
    %v562 = vtanh.pop %v560
    %565 = vrot.lane.b32.xlu0 %v561, 32
    %v566 = vpop.permute.xlu0 %565
    %567 = vrot.lane.b32.xlu0 %v562, 32
    %v568 = vpop.permute.xlu0 %567
    %571 = vst.msk [vmem:[#allocation2] sm:$0xff] %vm46, %v566
    %572 = vst.msk [vmem:[#allocation2 + $0x8] sm:$0xff] %vm46, %v568
    %v573 = vld [vmem:[%s5] sm:$0x3f]
    %v574 = vld [vmem:[%s6] sm:$0x7]
    %v575 = vld [vmem:[%s7] sm:$0x1]
    %v577 = vlaneseq
    %v578 = vshrl.u32 %v577, 7
    %v579 = vsub.s32 0, %v578
    %v580 = vrot.slane %v575, %v579
    %vm582 = vcmask 23552
    %v584 = vsel %vm582, %v573, 0
    %vm586 = vcmask 1042432
    %v588 = vsel %vm586, %v574, 0
    %590 = vmatprep.subr.mxu0 0.0
    %591 = vmatpush1.msra.mxu0 %v588
    %592 = vmatprep.subr.mxu0 0.0
    %593 = vmatpush1.msra.mxu0 0.0
    %594 = vmatprep.subr.mxu0 0.0
    %595 = vmatpush1.msra.mxu0 0.0
    %596 = vmatprep.subr.mxu0 0.0
    %597 = vmatpush1.msra.mxu0 0.0
    %598 = vmatprep.subr.mxu0 0.0
    %599 = vmatpush1.msra.mxu0 0.0
    %600 = vmatprep.subr.mxu0 0.0
    %601 = vmatpush1.msra.mxu0 0.0
    %602 = vmatprep.subr.mxu0 0.0
    %603 = vmatpush1.msra.mxu0 0.0
    %604 = vmatprep.subr.mxu0 0.0
    %605 = vmatpush1.msra.mxu0 0.0
    %606 = vmatprep.subr.mxu0 0.0
    %607 = vmatpush1.msra.mxu0 0.0
    %608 = vmatprep.subr.mxu0 0.0
    %609 = vmatpush1.msra.mxu0 0.0
    %610 = vmatprep.subr.mxu0 0.0
    %611 = vmatpush1.msra.mxu0 0.0
    %612 = vmatprep.subr.mxu0 0.0
    %613 = vmatpush1.msra.mxu0 0.0
    %614 = vmatprep.subr.mxu0 0.0
    %615 = vmatpush1.msra.mxu0 0.0
    %616 = vmatprep.subr.mxu0 0.0
    %617 = vmatpush1.msra.mxu0 0.0
    %618 = vmatprep.subr.mxu0 0.0
    %619 = vmatpush1.msra.mxu0 0.0
    %620 = vmatprep.subr.mxu0 0.0
    %621 = vmatpush1.msra.mxu0 0.0
    %622 = vmatprep.subr.mxu0 0.0
    %623 = vmatpush1.msra.mxu0 0.0
    %624 = vmatprep.subr.mxu0 0.0
    %625 = vmatpush1.msra.mxu0 0.0
    %626 = vmatprep.subr.mxu0 0.0
    %627 = vmatpush1.msra.mxu0 0.0
    %628 = vmatprep.subr.mxu0 0.0
    %629 = vmatpush1.msra.mxu0 0.0
    %630 = vmatprep.subr.mxu0 0.0
    %631 = vmatpush1.msra.mxu0 0.0
    %632 = vmatprep.subr.mxu0 0.0
    %633 = vmatpush1.msra.mxu0 0.0
    %634 = vmatprep.subr.mxu0 0.0
    %635 = vmatpush1.msra.mxu0 0.0
    %636 = vmatprep.subr.mxu0 0.0
    %637 = vmatpush1.msra.mxu0 0.0
    %638 = vmatprep.subr.mxu0 0.0
    %639 = vmatpush1.msra.mxu0 0.0
    %640 = vmatprep.subr.mxu0 0.0
    %641 = vmatpush1.msra.mxu0 0.0
    %642 = vmatprep.subr.mxu0 0.0
    %643 = vmatpush1.msra.mxu0 0.0
    %644 = vmatprep.subr.mxu0 0.0
    %645 = vmatpush1.msra.mxu0 0.0
    %646 = vmatprep.subr.mxu0 0.0
    %647 = vmatpush1.msra.mxu0 0.0
    %648 = vmatprep.subr.mxu0 0.0
    %649 = vmatpush1.msra.mxu0 0.0
    %650 = vmatprep.subr.mxu0 0.0
    %651 = vmatpush1.msra.mxu0 0.0
    %652 = vmatprep.subr.mxu0 0.0
    %653 = vmatpush1.msra.mxu0 0.0
    %654 = vmatprep.mubr.f32.mxu0 0.0
    %655 = vmatmul.mubr.f32.gmra.mrb[0].mxu0 %v584
    %v656 = vpop.f32.mrb[0].mxu0
    %v657 = vadd.f32 %v580, %v656
    %v658 = vpop.f32.mrb[0].mxu0
    %659 = vdwg.mxu0
    %vm660 = vcmask 259072
    %661 = vst.msk [vmem:[#allocation4] sm:$0x3f] %vm660, %v657
    // Predicated region
    $region34: #{compgcn_forward.1} parent=1 // pred_check
      _
    $region35: #{compgcn_forward.1} parent=1 // pred_check_branch
      %663 = sbr.rel (0) target = $region37
    $region36: #{compgcn_forward.1} parent=1 // pred_region
      %s665 = ssub.s32 256, 256
      %666 = vsyncadd [#allocation3], %s665
      %s667 = sshll.u32 [#allocation2], 4
      %s668 = int_to_ptr.vmem [resolvable:$true] %s667
      %673 = dma.vmem_to_hbm [thread:$0]  %s668, 256, %s8, [#allocation3], 128, 128, 8
    $region37: #{compgcn_forward.1} parent=1 // pred_fallthru
      _
    // Predicated region
    $region38: #{compgcn_forward.1} parent=1 // pred_check
      _
    $region39: #{compgcn_forward.1} parent=1 // pred_check_branch
      %675 = sbr.rel (0) target = $region41
    $region40: #{compgcn_forward.1} parent=1 // pred_region
      %s677 = ssub.s32 128, 128
      %678 = vsyncadd [#allocation5], %s677
      %s680 = sshll.u32 [#allocation4], 4
      %s681 = int_to_ptr.vmem [resolvable:$true] %s680
      %683 = dma.vmem_to_hbm [thread:$0]  %s681, 128, %s9, [#allocation5]
    $region41: #{compgcn_forward.1} parent=1 // pred_fallthru
      _
    // Predicated region
    $region42: #{compgcn_forward.1} parent=1 // pred_check
      _
    $region43: #{compgcn_forward.1} parent=1 // pred_check_branch
      %685 = sbr.rel (0) target = $region45
    $region44: #{compgcn_forward.1} parent=1 // pred_region
      %686 = dma.done [#allocation3], 256
    $region45: #{compgcn_forward.1} parent=1 // pred_fallthru
      _
    // Predicated region
    $region46: #{compgcn_forward.1} parent=1 // pred_check
      _
    $region47: #{compgcn_forward.1} parent=1 // pred_check_branch
      %688 = sbr.rel (0) target = $region49
    $region48: #{compgcn_forward.1} parent=1 // pred_region
      %689 = dma.done [#allocation5], 128
    $region49: #{compgcn_forward.1} parent=1 // pred_fallthru
      _
    %690 = vsyncpa [#allocation3], 1
    %691 = vsyncpa [#allocation5], 1

</llo_original>
